<compile_context>
chip_gen: v6e
topology: v6e:2x2x1
jax: 0.10.0
libtpu: 0.0.40
codegen_flags: <defaults>
</compile_context>

<pallas_src>
import functools
import math
import re

import jax
import jax.numpy as jnp
from jax import lax
from jax.experimental import pallas as pl
from jax.experimental.pallas import tpu as pltpu


def _round_up(x, m=128):
    return ((x + m - 1) // m) * m


def _tpu_generation(default=6):
    """Best-effort TPU generation sniff (5 -> v5e-like, 6 -> v6e, 7 -> v7x)."""
    try:
        kind = jax.devices()[0].device_kind.lower()
    except Exception:
        return default
    m = re.search(r"(\d+)", kind)
    return int(m.group(1)) if m else default


def _pick_batch_block(batch, seq_len, d, qkvp, op, *, target_rows, min_steps,
                      vmem_budget):
    """Choose TB = batch elements per grid step.

    Preference order:
      1. keep >= min_steps grid steps (v7x: lets the 'parallel' axis shard
         across the 2 TensorCores),
      2. stay within the per-step VMEM budget,
      3. smallest TB whose TB*N rows fill the MXU M dimension (target_rows),
         otherwise the largest block that still satisfies 1+2.
    """
    def fits(tb):
        x_blk = 2 * tb * seq_len * d * 2          # bf16 input, double buffered
        o_blk = 2 * tb * seq_len * op * 4         # f32 output, double buffered
        w_b = d * qkvp * 2 + qkvp * 4             # fused weight (bf16) + bias (f32)
        qkv = tb * seq_len * qkvp * 2             # bf16 qkv scratch
        attn = 4 * seq_len * seq_len * 4          # one live (N,N) score/prob tile
        return x_blk + o_blk + w_b + qkv + attn <= vmem_budget

    divisors = [t for t in range(1, batch + 1) if batch % t == 0]
    allowed = [t for t in divisors if batch // t >= min_steps] or divisors
    allowed = [t for t in allowed if fits(t)] or allowed[:1]
    for tb in allowed:                             # ascending
        if tb * seq_len >= target_rows:
            return tb
    return allowed[-1]


def _self_attention_kernel(x_ref, w_ref, b_ref, o_ref, qkv_ref, *,
                           tb, n, hp, op, exp_dtype):
    """One grid step: TB batch elements, fused QKV projection + attention."""
    # Fused QKV projection on the flattened (TB*N, D) rows: one wide MXU matmul.
    # x arrives in bf16 (cast in the wrapper), weights are bf16, accumulation
    # and bias add in f32.  The 1/sqrt(H) scale is already folded into wq/bq.
    x = x_ref[...].reshape(tb * n, -1)                       # (TB*N, D) bf16
    qkv = jnp.dot(x, w_ref[...], preferred_element_type=jnp.float32)
    qkv = qkv + b_ref[...]                                   # (TB*N, QKVp) f32
    qkv_ref[...] = qkv.reshape(tb, n, -1).astype(jnp.bfloat16)

    # Per-batch attention in a fori_loop: only one (N, N) tile live at a time.
    def body(bi, carry):
        qkv_b = qkv_ref[bi]                                  # (N, QKVp) bf16
        q = qkv_b[:, :hp]                                    # (N, Hp), pre-scaled
        k = qkv_b[:, hp:2 * hp]                              # (N, Hp)
        v = qkv_b[:, 2 * hp:]                                # (N, Op)

        # scores = q @ k^T without materializing a transpose of k.
        s = lax.dot_general(q, k, (((1,), (1,)), ((), ())),
                            preferred_element_type=jnp.float32)   # (N, N) f32

        # Numerically-stable softmax.  exp in bf16 on v6e/v7x (EUP-bound),
        # f32 on v5e; row max, denominator and reciprocal stay f32.
        m = jnp.max(s, axis=-1, keepdims=True)
        p = jnp.exp((s - m).astype(exp_dtype))
        denom = jnp.sum(p.astype(jnp.float32), axis=-1, keepdims=True)

        out = jnp.dot(p.astype(jnp.bfloat16), v,
                      preferred_element_type=jnp.float32)         # (N, Op) f32
        # Normalize the (N, Op) output instead of the (N, N) probabilities.
        out = out * pl.reciprocal(denom, approx=True)
        o_ref[bi] = out.astype(o_ref.dtype)
        return carry

    lax.fori_loop(0, tb, body, 0)


def self_attention(x, seq_lens, params):
    """x: (B, N, D) float32.  seq_lens unused (the torch reference ignores it)."""
    del seq_lens  # TODO(synk): reference forward never uses seq_lens (no masking)
    B, N, D = x.shape
    wq, bq, wk, bk, wv, bv = (params["wq"], params["bq"], params["wk"],
                              params["bk"], params["wv"], params["bv"])
    H = wq.shape[1]
    O = wv.shape[1]

    # Pad ONLY the output feature dims (H, O) to multiples of 128 so in-kernel
    # q/k/v slices and output stores are lane-dense.  The contraction dim D
    # keeps its natural size (block dim == full array dim is legal), so no
    # inflated padded copy of x is ever written to HBM.
    Hp, Op = _round_up(H), _round_up(O)
    QKVp = 2 * Hp + Op
    scale = 1.0 / math.sqrt(float(H))   # uses the ORIGINAL hidden dim

    def padc(a, cols):
        return jnp.pad(a, ((0, 0), (0, cols - a.shape[1])))

    # Fold the 1/sqrt(H) score scale into the query weights/bias; fuse Q|K|V.
    w_qkv = jnp.concatenate(
        [padc(wq * scale, Hp), padc(wk, Hp), padc(wv, Op)],
        axis=1).astype(jnp.bfloat16)                          # (D, QKVp) bf16
    b_qkv = jnp.concatenate(
        [padc(bq * scale, Hp), padc(bk, Hp), padc(bv, Op)],
        axis=1).astype(jnp.float32)                           # (1, QKVp) f32

    # Stream x as bf16 (kernel only uses it as a bf16 MXU operand): halves the
    # dominant HBM->VMEM DMA and the double-buffered x block.
    xb = x.astype(jnp.bfloat16)

    gen = _tpu_generation()
    target_rows = 128 if gen <= 5 else 256          # MXU M-fill per pass
    min_steps = 2 if gen >= 7 else 1                # keep both v7x TCs busy
    vmem_limit = (48 if gen >= 7 else 96) * 1024 * 1024
    exp_dtype = jnp.float32 if gen <= 5 else jnp.bfloat16   # bf16 EUP on v6e/v7x

    TB = _pick_batch_block(B, N, D, QKVp, Op,
                           target_rows=target_rows, min_steps=min_steps,
                           vmem_budget=int(0.75 * vmem_limit))

    kernel = functools.partial(_self_attention_kernel,
                               tb=TB, n=N, hp=Hp, op=Op, exp_dtype=exp_dtype)

    out = pl.pallas_call(
        kernel,
        out_shape=jax.ShapeDtypeStruct((B, N, Op), x.dtype),
        grid_spec=pltpu.PrefetchScalarGridSpec(
            num_scalar_prefetch=0,
            grid=(B // TB,),
            in_specs=[
                pl.BlockSpec((TB, N, D), lambda i: (i, 0, 0)),   # x block (bf16)
                pl.BlockSpec((D, QKVp), lambda i: (0, 0)),       # fused W
                pl.BlockSpec((1, QKVp), lambda i: (0, 0)),       # fused b
            ],
            out_specs=pl.BlockSpec((TB, N, Op), lambda i: (i, 0, 0)),
            scratch_shapes=[pltpu.VMEM((TB, N, QKVp), jnp.bfloat16)],
        ),
        compiler_params=pltpu.CompilerParams(
            dimension_semantics=("parallel",),
            vmem_limit_bytes=vmem_limit,
        ),
    )(xb, w_qkv, b_qkv)

    return out[:, :, :O]   # drop lane padding on the output feature dim


def init_params(key, input_dim, hidden_dim, output_dim):
    """Deterministic init mimicking torch.nn.Linear (U(-1/sqrt(fan_in), ...))."""
    ks = jax.random.split(key, 6)

    def lin(kw, kb, fan_in, fan_out):
        bound = 1.0 / math.sqrt(fan_in)
        w = jax.random.uniform(kw, (fan_in, fan_out), jnp.float32, -bound, bound)
        b = jax.random.uniform(kb, (1, fan_out), jnp.float32, -bound, bound)
        return w, b

    wq, bq = lin(ks[0], ks[1], input_dim, hidden_dim)
    wk, bk = lin(ks[2], ks[3], input_dim, hidden_dim)
    wv, bv = lin(ks[4], ks[5], input_dim, output_dim)
    return {"wq": wq, "bq": bq, "wk": wk, "bk": bk, "wv": wv, "bv": bv}


def _reference(x, params, hidden_dim):
    q = x @ params["wq"] + params["bq"]
    k = x @ params["wk"] + params["bk"]
    v = x @ params["wv"] + params["bv"]
    s = jax.nn.softmax((q @ jnp.swapaxes(k, -2, -1)) / math.sqrt(hidden_dim),
                       axis=-1)
    return s @ v


if __name__ == "__main__":
    key = jax.random.PRNGKey(0)
    kx, kp = jax.random.split(key)

    B, N = 2, 8            # batch, seq_len
    input_dim, hidden_dim, output_dim = 32, 32, 32

    x = jax.random.normal(kx, (B, N, input_dim), jnp.float32)
    seq_lens = jnp.full((B,), N, jnp.int32)
    params = init_params(kp, input_dim, hidden_dim, output_dim)

    out = self_attention(x, seq_lens, params)
    out = jax.block_until_ready(out)

    ref = _reference(x, params, hidden_dim)
    assert out.shape == (B, N, output_dim)
    # bf16 MXU operands (+ bf16 exp on v6e/v7x) with f32 accumulation ->
    # slightly looser tolerance than pure f32.
    assert jnp.allclose(out, ref, atol=3e-2, rtol=3e-2), "mismatch vs reference"

    print("KERNEL_OK")
</pallas_src>

<mosaic_0001>
module attributes {stable_mosaic.version = 11 : i64} {
  func.func @_self_attention_kernel(%arg0: i32, %arg1: memref<2x8x32xbf16, #tpu.memory_space<vmem>>, %arg2: memref<32x384xbf16, #tpu.memory_space<vmem>>, %arg3: memref<1x384xf32, #tpu.memory_space<vmem>>, %arg4: memref<2x8x128xf32, #tpu.memory_space<vmem>>, %arg5: memref<2x8x384xbf16, #tpu.memory_space<vmem>>) attributes {dimension_semantics = [#tpu.dimension_semantics<parallel>], iteration_bounds = array<i64: 1>, scalar_prefetch = 0 : i64, scratch_operands = 1 : i64, tpu.core_type = #tpu.core_type<tc>, window_params = [{transform_indices = @transform_0, window_bounds = array<i64: 2, 8, 32>}, {pipeline_mode = #tpu.pipeline_mode<synchronous>, transform_indices = @transform_1, window_bounds = array<i64: 32, 384>}, {pipeline_mode = #tpu.pipeline_mode<synchronous>, transform_indices = @transform_2, window_bounds = array<i64: 1, 384>}, {transform_indices = @transform_3, window_bounds = array<i64: 2, 8, 128>}]} {
    %c0 = arith.constant 0 : index
    %c0_0 = arith.constant 0 : index
    %c0_1 = arith.constant 0 : index
    %0 = vector.load %arg1[%c0, %c0_0, %c0_1] : memref<2x8x32xbf16, #tpu.memory_space<vmem>>, vector<2x8x32xbf16>
    %1 = vector.shape_cast %0 : vector<2x8x32xbf16> to vector<16x32xbf16>
    %c0_2 = arith.constant 0 : index
    %c0_3 = arith.constant 0 : index
    %2 = vector.load %arg2[%c0_2, %c0_3] : memref<32x384xbf16, #tpu.memory_space<vmem>>, vector<32x384xbf16>
    %cst = arith.constant dense<0.000000e+00> : vector<16x384xf32>
    %3 = tpu.matmul %1, %2, %cst {dimension_numbers = #tpu.dot_dimension_numbers<[1], [0], [0], [1], [0, 0, 1, 1], [], []>} : vector<16x32xbf16>, vector<32x384xbf16>, vector<16x384xf32> -> vector<16x384xf32>
    %c0_4 = arith.constant 0 : index
    %c0_5 = arith.constant 0 : index
    %4 = vector.load %arg3[%c0_4, %c0_5] : memref<1x384xf32, #tpu.memory_space<vmem>>, vector<1x384xf32>
    %5 = vector.broadcast %4 : vector<1x384xf32> to vector<16x384xf32>
    %6 = arith.addf %3, %5 : vector<16x384xf32>
    %7 = vector.shape_cast %6 : vector<16x384xf32> to vector<2x8x384xf32>
    %8 = arith.truncf %7 : vector<2x8x384xf32> to vector<2x8x384xbf16>
    %c0_6 = arith.constant 0 : index
    %c0_7 = arith.constant 0 : index
    %c0_8 = arith.constant 0 : index
    %9 = vector.load %arg5[%c0_6, %c0_7, %c0_8] : memref<2x8x384xbf16, #tpu.memory_space<vmem>>, vector<2x8x384xbf16>
    tpu.vector_store %arg5[%c0_6, %c0_7, %c0_8], %8 {strides = array<i32>} : memref<2x8x384xbf16, #tpu.memory_space<vmem>>, vector<2x8x384xbf16>,
    %c0_i32 = arith.constant 0 : i32
    %c2_i32 = arith.constant 2 : i32
    %10 = arith.addi %c0_i32, %c2_i32 : i32
    %c1_i32 = arith.constant 1 : i32
    scf.for %arg6 = %c0_i32 to %10 step %c1_i32  : i32 {
      %11 = arith.index_cast %arg6 : i32 to index
      %c0_10 = arith.constant 0 : index
      %c0_11 = arith.constant 0 : index
      %12 = vector.load %arg5[%11, %c0_10, %c0_11] : memref<2x8x384xbf16, #tpu.memory_space<vmem>>, vector<1x8x384xbf16>
      %13 = vector.shape_cast %12 : vector<1x8x384xbf16> to vector<8x384xbf16>
      %14 = vector.extract_strided_slice %13 {offsets = [0, 0], sizes = [8, 128], strides = [1, 1]} : vector<8x384xbf16> to vector<8x128xbf16>
      %15 = vector.extract_strided_slice %13 {offsets = [0, 128], sizes = [8, 128], strides = [1, 1]} : vector<8x384xbf16> to vector<8x128xbf16>
      %16 = vector.extract_strided_slice %13 {offsets = [0, 256], sizes = [8, 128], strides = [1, 1]} : vector<8x384xbf16> to vector<8x128xbf16>
      %cst_12 = arith.constant dense<0.000000e+00> : vector<8x8xf32>
      %17 = tpu.matmul %14, %15, %cst_12 {dimension_numbers = #tpu.dot_dimension_numbers<[1], [1], [0], [0], [0, 0, 1, 0], [], []>} : vector<8x128xbf16>, vector<8x128xbf16>, vector<8x8xf32> -> vector<8x8xf32>
      %cst_13 = arith.constant dense<0xFF800000> : vector<8xf32>
      %18 = vector.multi_reduction <maximumf>, %17, %cst_13 [1] : vector<8x8xf32> to vector<8xf32>
      %19 = vector.shape_cast %18 : vector<8xf32> to vector<8x1xf32>
      %20 = vector.broadcast %19 : vector<8x1xf32> to vector<8x8xf32>
      %21 = arith.subf %17, %20 : vector<8x8xf32>
      %22 = arith.truncf %21 : vector<8x8xf32> to vector<8x8xbf16>
      %23 = math.exp %22 : vector<8x8xbf16>
      %24 = arith.extf %23 : vector<8x8xbf16> to vector<8x8xf32>
      %cst_14 = arith.constant dense<0.000000e+00> : vector<8xf32>
      %25 = vector.multi_reduction <add>, %24, %cst_14 [1] : vector<8x8xf32> to vector<8xf32>
      %26 = vector.shape_cast %25 : vector<8xf32> to vector<8x1xf32>
      %cst_15 = arith.constant dense<0.000000e+00> : vector<8x128xf32>
      %27 = tpu.matmul %23, %16, %cst_15 {dimension_numbers = #tpu.dot_dimension_numbers<[1], [0], [0], [1], [0, 0, 1, 1], [], []>} : vector<8x8xbf16>, vector<8x128xbf16>, vector<8x128xf32> -> vector<8x128xf32>
      %28 = tpu.reciprocal %26 {approx = true} : vector<8x1xf32> -> vector<8x1xf32>
      %29 = vector.broadcast %28 : vector<8x1xf32> to vector<8x128xf32>
      %30 = arith.mulf %27, %29 : vector<8x128xf32>
      %31 = arith.index_cast %arg6 : i32 to index
      %c0_16 = arith.constant 0 : index
      %c0_17 = arith.constant 0 : index
      %32 = vector.load %arg4[%31, %c0_16, %c0_17] : memref<2x8x128xf32, #tpu.memory_space<vmem>>, vector<1x8x128xf32>
      %33 = vector.shape_cast %32 : vector<1x8x128xf32> to vector<8x128xf32>
      %34 = vector.shape_cast %30 : vector<8x128xf32> to vector<1x8x128xf32>
      tpu.vector_store %arg4[%31, %c0_16, %c0_17], %34 {strides = array<i32>} : memref<2x8x128xf32, #tpu.memory_space<vmem>>, vector<1x8x128xf32>,
    }
    %c2_i32_9 = arith.constant 2 : i32
    return
  }
  func.func @transform_0(%arg0: i32) -> (i32, i32, i32) {
    %c0_i32 = arith.constant 0 : i32
    %c0_i32_0 = arith.constant 0 : i32
    %c0_i32_1 = arith.constant 0 : i32
    return %arg0, %c0_i32, %c0_i32_0 : i32, i32, i32
  }
  func.func @transform_1(%arg0: i32) -> (i32, i32) {
    %c0_i32 = arith.constant 0 : i32
    %c0_i32_0 = arith.constant 0 : i32
    %c0_i32_1 = arith.constant 0 : i32
    return %c0_i32, %c0_i32_0 : i32, i32
  }
  func.func @transform_2(%arg0: i32) -> (i32, i32) {
    %c0_i32 = arith.constant 0 : i32
    %c0_i32_0 = arith.constant 0 : i32
    %c0_i32_1 = arith.constant 0 : i32
    return %c0_i32, %c0_i32_0 : i32, i32
  }
  func.func @transform_3(%arg0: i32) -> (i32, i32, i32) {
    %c0_i32 = arith.constant 0 : i32
    %c0_i32_0 = arith.constant 0 : i32
    %c0_i32_1 = arith.constant 0 : i32
    return %arg0, %c0_i32, %c0_i32_0 : i32, i32, i32
  }
}

</mosaic_0001>

<llo_original>
// kernel: tpu_custom_call.1
$region0: #{tpu_custom_call.1}
  #allocation0 [shape = 'u32[]', space=smem, size = 0x4, offset = 0x4, fixed_abs, tag = 'smem constant byte address 0x4 - core index']
  #allocation1 [shape = 'u32[144,128]{1,0:T(1,128)}', space=vmem, size = 0x12000, scoped, tag = 'internal scratch']
  #allocation2 [shape = 'bf16[2,8,384]{2,1,0:T(8,128)(2,1)}', space=vmem, size = 0x3000, scoped, tag = 'scratch operand']
  %s0 = inlined_call_operand.hbm [shape: bf16[2,8,32], index: 0, kind: input, shape index: {}]
  %s1 = inlined_call_operand.hbm [shape: bf16[32,384], index: 1, kind: input, shape index: {}]
  %s2 = inlined_call_operand.vmem [shape: f32[1,384], index: 2, kind: input, shape index: {}]
  %s3 = inlined_call_operand.hbm [shape: f32[2,8,128], index: 3, kind: output, shape index: {}]
  %s4 = sld [smem:[#allocation0]]
  $region37: #{tpu_custom_call.1} parent=0
    _
  %s6 = ssub.s32 1, %s4
  %s7 = scalar_select 0, %s6, %s4
  $region1: #{tpu_custom_call.1} parent=0
    #allocation3 [shape = 'u8[4096]{0}', space=vmem, size = 0x1000, scoped, tag = 'input window, operand 0, single buffered']
    #allocation4 [shape = 's32[1]{0}', space=sflag, size = 0x4, scoped, tag = 'scoped memory for tpu_custom_call.1']
    #allocation5 [shape = 's32[1]{0}', space=sflag, size = 0x4, scoped, tag = 'scoped memory for tpu_custom_call.1']
    #allocation6 [shape = 'u8[24576]{0}', space=vmem, size = 0x6000, scoped, tag = 'input window, operand 1, single buffered']
    #allocation7 [shape = 's32[1]{0}', space=sflag, size = 0x4, scoped, tag = 'scoped memory for tpu_custom_call.1']
    #allocation8 [shape = 'u8[8192]{0}', space=vmem, size = 0x2000, scoped, tag = 'output window, operand 0, single buffered']
    %8 = vsyncpa [#allocation4], 0
    %9 = vsyncpa [#allocation7], 0
    %10 = vsyncpa [#allocation5], 0
    // Predicated region
    $region2: #{tpu_custom_call.1} parent=1 // pred_check
      _
    $region3: #{tpu_custom_call.1} parent=1 // pred_check_branch
      %12 = sbr.rel (0) target = $region5
    $region4: #{tpu_custom_call.1} parent=1 // pred_region
      %s14 = ssub.s32 128, 128
      %15 = vsyncadd [#allocation4], %s14
      %s16 = sshll.u32 [#allocation3], 4
      %s17 = int_to_ptr.vmem [resolvable:$true] %s16
      %22 = dma.hbm_to_vmem [thread:$0]  %s0, 128, %s17, [#allocation4], 64, 64, 4
    $region5: #{tpu_custom_call.1} parent=1 // pred_fallthru
      _
    // Predicated region
    $region6: #{tpu_custom_call.1} parent=1 // pred_check
      _
    $region7: #{tpu_custom_call.1} parent=1 // pred_check_branch
      %24 = sbr.rel (0) target = $region9
    $region8: #{tpu_custom_call.1} parent=1 // pred_region
      %s26 = ssub.s32 768, 768
      %27 = vsyncadd [#allocation7], %s26
      %s28 = sshll.u32 [#allocation6], 4
      %s29 = int_to_ptr.vmem [resolvable:$true] %s28
      %34 = dma.hbm_to_vmem [thread:$0]  %s1, 768, %s29, [#allocation7], 192, 192, 12
    $region9: #{tpu_custom_call.1} parent=1 // pred_fallthru
      _
    // Predicated region
    $region10: #{tpu_custom_call.1} parent=1 // pred_check
      _
    $region11: #{tpu_custom_call.1} parent=1 // pred_check_branch
      %36 = sbr.rel (0) target = $region13
    $region12: #{tpu_custom_call.1} parent=1 // pred_region
      _
    $region13: #{tpu_custom_call.1} parent=1 // pred_fallthru
      _
    // Predicated region
    $region14: #{tpu_custom_call.1} parent=1 // pred_check
      _
    $region15: #{tpu_custom_call.1} parent=1 // pred_check_branch
      %38 = sbr.rel (0) target = $region17
    $region16: #{tpu_custom_call.1} parent=1 // pred_region
      %39 = dma.done [#allocation4], 128
    $region17: #{tpu_custom_call.1} parent=1 // pred_fallthru
      _
    // Predicated region
    $region18: #{tpu_custom_call.1} parent=1 // pred_check
      _
    $region19: #{tpu_custom_call.1} parent=1 // pred_check_branch
      %41 = sbr.rel (0) target = $region21
    $region20: #{tpu_custom_call.1} parent=1 // pred_region
      %42 = dma.done [#allocation7], 768
    $region21: #{tpu_custom_call.1} parent=1 // pred_fallthru
      _
    %v44 = vld [vmem:[#allocation3] sm:$0xf]
    %v45 = vld [vmem:[#allocation3 + $0x4] sm:$0xf]
    %v46 = vld [vmem:[#allocation6] sm:$0xff]
    %v47 = vld [vmem:[#allocation6 + $0x8] sm:$0xf]
    %v48 = vld [vmem:[#allocation6 + $0xc] sm:$0xff]
    %v49 = vld [vmem:[#allocation6 + $0x14] sm:$0xf]
    %v50 = vld [vmem:[#allocation6 + $0x18] sm:$0xff]
    %v51 = vld [vmem:[#allocation6 + $0x20] sm:$0xf]
    %v52 = vld [vmem:[#allocation6 + $0x24] sm:$0xff]
    %v53 = vld [vmem:[#allocation6 + $0x2c] sm:$0xf]
    %v54 = vld [vmem:[%s2] sm:$0x7]
    %v56 = vlaneseq
    %v57 = vshrl.u32 %v56, 7
    %v58 = vsub.s32 0, %v57
    %v59 = vrot.slane %v54, %v58
    %v60 = vlaneseq
    %v61 = vshrl.u32 %v60, 7
    %v62 = vsub.s32 1, %v61
    %v63 = vrot.slane %v54, %v62
    %v64 = vlaneseq
    %v65 = vshrl.u32 %v64, 7
    %v66 = vsub.s32 2, %v65
    %v67 = vrot.slane %v54, %v66
    %v73 = vunpack.c.l.b16 %v44
    %v74 = vunpack.c.l.b16 %v45
    %v75 = vpack.c.b16 %v74, %v73
    %v84 = vunpack.c.l.b16 %v46
    %v85 = vunpack.c.h.b16 %v46
    %v86 = vunpack.c.l.b16 %v47
    %v87 = vunpack.c.l.b16 %v48
    %v88 = vunpack.c.h.b16 %v48
    %v89 = vunpack.c.l.b16 %v49
    %v90 = vunpack.c.l.b16 %v50
    %v91 = vunpack.c.h.b16 %v50
    %v92 = vunpack.c.l.b16 %v51
    %v93 = vunpack.c.l.b16 %v52
    %v94 = vunpack.c.h.b16 %v52
    %v95 = vunpack.c.l.b16 %v53
    %v96 = vpack.c.b16 %v87, %v84
    %v97 = vpack.c.b16 %v88, %v85
    %v98 = vpack.c.b16 %v89, %v86
    %v99 = vpack.c.b16 %v93, %v90
    %v100 = vpack.c.b16 %v94, %v91
    %v101 = vpack.c.b16 %v95, %v92
    %vm108 = vcmask 261120
    %v110 = vsel %vm108, %v75, 0
    %112 = vmatprep.subr.bf16.mxu0 0
    %113 = vmatpush1.bf16.msra.mxu0 0
    %114 = vmatprep.subr.bf16.mxu0 0
    %115 = vmatpush1.bf16.msra.mxu0 0
    %116 = vmatprep.subr.bf16.mxu0 0
    %117 = vmatpush1.bf16.msra.mxu0 0
    %118 = vmatprep.subr.bf16.mxu0 0
    %119 = vmatpush1.bf16.msra.mxu0 0
    %120 = vmatprep.subr.bf16.mxu0 0
    %121 = vmatpush1.bf16.msra.mxu0 0
    %122 = vmatprep.subr.bf16.mxu0 0
    %123 = vmatpush1.bf16.msra.mxu0 0
    %124 = vmatprep.subr.bf16.mxu0 %v100
    %125 = vmatpush1.bf16.msra.mxu0 %v99
    %126 = vmatprep.subr.bf16.mxu0 %v97
    %127 = vmatpush1.bf16.msra.mxu0 %v96
    %128 = vmatprep.subr.bf16.mxu0 0
    %129 = vmatpush2.bf16.msra.mxu0 0
    %130 = vmatprep.subr.bf16.mxu0 0
    %131 = vmatpush2.bf16.msra.mxu0 0
    %132 = vmatprep.subr.bf16.mxu0 0
    %133 = vmatpush2.bf16.msra.mxu0 0
    %134 = vmatprep.subr.bf16.mxu0 0
    %135 = vmatpush2.bf16.msra.mxu0 0
    %136 = vmatprep.subr.bf16.mxu0 0
    %137 = vmatpush2.bf16.msra.mxu0 0
    %138 = vmatprep.subr.bf16.mxu0 0
    %139 = vmatpush2.bf16.msra.mxu0 0
    %140 = vmatprep.subr.bf16.mxu0 0
    %141 = vmatpush2.bf16.msra.mxu0 0
    %142 = vmatprep.subr.bf16.mxu0 0
    %143 = vmatpush2.bf16.msra.mxu0 0
    %144 = vmatprep.mubr.bf16.mxu0 0
    %145 = vmatmul.mubr.bf16.gmra.mxu0 %v110
    %v146 = vpop.f32.mrf.mxu0
    %v147 = vadd.f32 %v59, %v146
    %v148 = vpop.f32.mrf.mxu0
    %v149 = vadd.f32 %v63, %v148
    %v150 = vpop.f32.mrf.mxu0
    %v151 = vadd.f32 %v59, %v150
    %v152 = vpop.f32.mrf.mxu0
    %v153 = vadd.f32 %v63, %v152
    %154 = vdwg.mxu0
    %155 = vmatprep.subr.bf16.mxu0 0
    %156 = vmatpush1.bf16.msra.mxu0 0
    %157 = vmatprep.subr.bf16.mxu0 0
    %158 = vmatpush1.bf16.msra.mxu0 0
    %159 = vmatprep.subr.bf16.mxu0 0
    %160 = vmatpush1.bf16.msra.mxu0 0
    %161 = vmatprep.subr.bf16.mxu0 0
    %162 = vmatpush1.bf16.msra.mxu0 0
    %163 = vmatprep.subr.bf16.mxu0 0
    %164 = vmatpush1.bf16.msra.mxu0 0
    %165 = vmatprep.subr.bf16.mxu0 0
    %166 = vmatpush1.bf16.msra.mxu0 0
    %167 = vmatprep.subr.bf16.mxu0 0
    %168 = vmatpush1.bf16.msra.mxu0 %v101
    %169 = vmatprep.subr.bf16.mxu0 0
    %170 = vmatpush1.bf16.msra.mxu0 %v98
    %171 = vmatprep.subr.bf16.mxu0 0
    %172 = vmatpush2.bf16.msra.mxu0 0
    %173 = vmatprep.subr.bf16.mxu0 0
    %174 = vmatpush2.bf16.msra.mxu0 0
    %175 = vmatprep.subr.bf16.mxu0 0
    %176 = vmatpush2.bf16.msra.mxu0 0
    %177 = vmatprep.subr.bf16.mxu0 0
    %178 = vmatpush2.bf16.msra.mxu0 0
    %179 = vmatprep.subr.bf16.mxu0 0
    %180 = vmatpush2.bf16.msra.mxu0 0
    %181 = vmatprep.subr.bf16.mxu0 0
    %182 = vmatpush2.bf16.msra.mxu0 0
    %183 = vmatprep.subr.bf16.mxu0 0
    %184 = vmatpush2.bf16.msra.mxu0 0
    %185 = vmatprep.subr.bf16.mxu0 0
    %186 = vmatpush2.bf16.msra.mxu0 0
    %187 = vmatprep.mubr.bf16.mxu0 0
    %188 = vmatmul.mubr.bf16.gmra.mxu0 %v110
    %v189 = vpop.f32.mrf.mxu0
    %v190 = vadd.f32 %v67, %v189
    %v191 = vpop.f32.mrf.mxu0
    %v192 = vpop.f32.mrf.mxu0
    %v193 = vadd.f32 %v67, %v192
    %v194 = vpop.f32.mrf.mxu0
    %195 = vdwg.mxu0
    %v196 = vpack.c.bf16 %v147, %v147
    %v197 = vpack.c.bf16 %v149, %v149
    %v198 = vpack.c.bf16 %v190, %v190
    %v199 = vpack.c.bf16 %v151, %v151
    %v200 = vpack.c.bf16 %v153, %v153
    %v201 = vpack.c.bf16 %v193, %v193
    %v208 = vunpack.c.l.b16 %v196
    %v209 = vunpack.c.l.b16 %v197
    %v210 = vunpack.c.l.b16 %v198
    %v211 = vunpack.c.l.b16 %v199
    %v212 = vunpack.c.l.b16 %v200
    %v213 = vunpack.c.l.b16 %v201
    %v214 = vpack.c.b16 %v209, %v208
    %v215 = vpack.c.b16 %v210, %v210
    %v216 = vpack.c.b16 %v212, %v211
    %v217 = vpack.c.b16 %v213, %v213
    %222 = vst [vmem:[#allocation2] sm:$0xff] %v214
    %223 = vst [vmem:[#allocation2 + $0x8] sm:$0xf] %v215
    %224 = vst [vmem:[#allocation2 + $0xc] sm:$0xff] %v216
    %225 = vst [vmem:[#allocation2 + $0x14] sm:$0xf] %v217
    loop: start=0, step=1, limit=2
    $region22: #{tpu_custom_call.1} parent=1 // loop_pre_header
      _
    $region23: #{tpu_custom_call.1} parent=1 // loop_header
      %s227 = sphi 0, %s231
      %p228 = scmp.ge.s32.totalorder %s227, 2
    $region24: #{tpu_custom_call.1} parent=1 // loop_header_branch
      %230 = sbr.rel (%p228) target = $region28
    $region25: #{tpu_custom_call.1} parent=1 // loop_body
      %s232 = smul.u32 %s227, 3
      %s233 = smul.addr %s232, 4
      %s234 = scalar_lea.vmem [#allocation2], %s233
      %v235 = vld [vmem:[%s234] sm:$0xff]
      %v236 = vld [vmem:[%s234 + $0x8] sm:$0xf]
      %v238 = vunpack.c.h.b16 %v235
      %v239 = vpack.c.b16 %v238, %v238
      %241 = vmatprep.subr.bf16.mxu0 0
      %242 = vmatpush1.bf16.xpose.msra.mxu0 0
      %243 = vmatprep.subr.bf16.mxu0 0
      %244 = vmatpush1.bf16.xpose.msra.mxu0 0
      %245 = vmatprep.subr.bf16.mxu0 0
      %246 = vmatpush1.bf16.xpose.msra.mxu0 0
      %247 = vmatprep.subr.bf16.mxu0 0
      %248 = vmatpush1.bf16.xpose.msra.mxu0 0
      %249 = vmatprep.subr.bf16.mxu0 0
      %250 = vmatpush1.bf16.xpose.msra.mxu0 0
      %251 = vmatprep.subr.bf16.mxu0 0
      %252 = vmatpush1.bf16.xpose.msra.mxu0 0
      %253 = vmatprep.subr.bf16.mxu0 0
      %254 = vmatpush1.bf16.xpose.msra.mxu0 0
      %255 = vmatprep.subr.bf16.mxu0 0
      %256 = vmatpush1.bf16.xpose.msra.mxu0 %v239
      %257 = vmatprep.subr.bf16.mxu0 0
      %258 = vmatpush2.bf16.xpose.msra.mxu0 0
      %259 = vmatprep.subr.bf16.mxu0 0
      %260 = vmatpush2.bf16.xpose.msra.mxu0 0
      %261 = vmatprep.subr.bf16.mxu0 0
      %262 = vmatpush2.bf16.xpose.msra.mxu0 0
      %263 = vmatprep.subr.bf16.mxu0 0
      %264 = vmatpush2.bf16.xpose.msra.mxu0 0
      %265 = vmatprep.subr.bf16.mxu0 0
      %266 = vmatpush2.bf16.xpose.msra.mxu0 0
      %267 = vmatprep.subr.bf16.mxu0 0
      %268 = vmatpush2.bf16.xpose.msra.mxu0 0
      %269 = vmatprep.subr.bf16.mxu0 0
      %270 = vmatpush2.bf16.xpose.msra.mxu0 0
      %271 = vmatprep.subr.bf16.mxu0 0
      %272 = vmatpush2.bf16.xpose.msra.mxu0 0
      %273 = vmatprep.mubr.bf16.mxu0 0
      %274 = vmatmul.mubr.bf16.gmra.mxu0 %v235
      %v275 = vpop.f32.mrf.mxu0
      %v276 = vadd.f32 0.0, %v275
      %v277 = vpop.f32.mrf.mxu0
      %v278 = vpop.f32.mrf.mxu0
      %v279 = vpop.f32.mrf.mxu0
      %280 = vdwg.mxu0
      %vm281 = vcmask 64512
      %v282 = vsel %vm281, %v276, -inf
      %283 = vmax.xlane.f32.xlu0 %v282
      %v284 = vpop.xlane.xlu0 %283
      %v285 = vsub.f32 %v276, %v284
      %v286 = vpack.c.bf16 %v285, %v285
      %v288 = vmul.bf16 %v286, 1069105081
      %v289 = vpow.bf16.pop %v288
      %v290 = vunpack.c.l.bf16 %v289
      %v291 = vsel %vm281, %v290, 0.0
      %292 = vadd.xlane.f32.xlu0 %v291
      %v293 = vpop.xlane.xlu0 %292
      %v295 = vsel %vm281, %v289, 0
      %vm297 = vcmask 1043456
      %v299 = vsel %vm297, %v236, 0
      %301 = vmatprep.subr.bf16.mxu0 0
      %302 = vmatpush1.bf16.msra.mxu0 0
      %303 = vmatprep.subr.bf16.mxu0 0
      %304 = vmatpush1.bf16.msra.mxu0 0
      %305 = vmatprep.subr.bf16.mxu0 0
      %306 = vmatpush1.bf16.msra.mxu0 0
      %307 = vmatprep.subr.bf16.mxu0 0
      %308 = vmatpush1.bf16.msra.mxu0 0
      %309 = vmatprep.subr.bf16.mxu0 0
      %310 = vmatpush1.bf16.msra.mxu0 0
      %311 = vmatprep.subr.bf16.mxu0 0
      %312 = vmatpush1.bf16.msra.mxu0 0
      %313 = vmatprep.subr.bf16.mxu0 0
      %314 = vmatpush1.bf16.msra.mxu0 0
      %315 = vmatprep.subr.bf16.mxu0 0
      %316 = vmatpush1.bf16.msra.mxu0 %v299
      %317 = vmatprep.subr.bf16.mxu0 0
      %318 = vmatpush2.bf16.msra.mxu0 0
      %319 = vmatprep.subr.bf16.mxu0 0
      %320 = vmatpush2.bf16.msra.mxu0 0
      %321 = vmatprep.subr.bf16.mxu0 0
      %322 = vmatpush2.bf16.msra.mxu0 0
      %323 = vmatprep.subr.bf16.mxu0 0
      %324 = vmatpush2.bf16.msra.mxu0 0
      %325 = vmatprep.subr.bf16.mxu0 0
      %326 = vmatpush2.bf16.msra.mxu0 0
      %327 = vmatprep.subr.bf16.mxu0 0
      %328 = vmatpush2.bf16.msra.mxu0 0
      %329 = vmatprep.subr.bf16.mxu0 0
      %330 = vmatpush2.bf16.msra.mxu0 0
      %331 = vmatprep.subr.bf16.mxu0 0
      %332 = vmatpush2.bf16.msra.mxu0 0
      %333 = vmatprep.mubr.bf16.mxu0 0
      %334 = vmatmul.mubr.bf16.gmra.mxu0 %v295
      %v335 = vpop.f32.mrf.mxu0
      %v336 = vadd.f32 0.0, %v335
      %v337 = vpop.f32.mrf.mxu0
      %v338 = vpop.f32.mrf.mxu0
      %v339 = vpop.f32.mrf.mxu0
      %340 = vdwg.mxu0
      %v341 = vrcp.pop %v293
      %v342 = vmul.f32 %v336, %v341
      %s343 = smul.u32 %s227, 8
      %s344 = scalar_lea.vmem [#allocation8], %s343
      %345 = vst [vmem:[%s344] sm:$0xff] %v342
    $region26: #{tpu_custom_call.1} parent=1 // loop_footer
      %s231 = sadd.s32 1, %s227
    $region27: #{tpu_custom_call.1} parent=1 // loop_footer_branch
      %226 = sbr.rel target = $region23
    $region28: #{tpu_custom_call.1} parent=1 // loop_exit
      _
    // Predicated region
    $region29: #{tpu_custom_call.1} parent=1 // pred_check
      _
    $region30: #{tpu_custom_call.1} parent=1 // pred_check_branch
      %347 = sbr.rel (0) target = $region32
    $region31: #{tpu_custom_call.1} parent=1 // pred_region
      %s349 = ssub.s32 256, 256
      %350 = vsyncadd [#allocation5], %s349
      %s351 = sshll.u32 [#allocation8], 4
      %s352 = int_to_ptr.vmem [resolvable:$true] %s351
      %357 = dma.vmem_to_hbm [thread:$0]  %s352, 256, %s3, [#allocation5], 128, 128, 8
    $region32: #{tpu_custom_call.1} parent=1 // pred_fallthru
      _
    // Predicated region
    $region33: #{tpu_custom_call.1} parent=1 // pred_check
      _
    $region34: #{tpu_custom_call.1} parent=1 // pred_check_branch
      %359 = sbr.rel (0) target = $region36
    $region35: #{tpu_custom_call.1} parent=1 // pred_region
      %360 = dma.done [#allocation5], 256
    $region36: #{tpu_custom_call.1} parent=1 // pred_fallthru
      _
    %361 = vsyncpa [#allocation4], 1
    %362 = vsyncpa [#allocation7], 1
    %363 = vsyncpa [#allocation5], 1

</llo_original>
